<compile_context>
chip_gen: v6e
topology: v6e:2x2x1
jax: 0.10.0
libtpu: 0.0.40
codegen_flags: <defaults>
</compile_context>

<pallas_src>
import functools
import math

import jax
import jax.numpy as jnp
from jax.experimental import pallas as pl
from jax.experimental.pallas import tpu as pltpu


# ----------------------------- kernels --------------------------------------
def _tln_scalar_kernel(m_ref, s_ref, x_ref, o_ref):
    # scalar=True path:
    #   std, mean = torch.std_mean(x, dim=1, unbiased=False, keepdim=True)
    #   y = s / std * (x - mean + m)
    x = x_ref[...].astype(jnp.float32)                     # (TB, D, TL)
    mean = jnp.mean(x, axis=1, keepdims=True)              # (TB, 1, TL)
    xc = x - mean                                          # reused below
    var = jnp.mean(xc * xc, axis=1, keepdims=True)
    scale = s_ref[0, 0] * jax.lax.rsqrt(var)               # fold s; EUP rsqrt
    o_ref[...] = (scale * (xc + m_ref[0, 0])).astype(o_ref.dtype)


def _tln_layernorm_kernel(wb_ref, x_ref, o_ref, *, eps):
    # scalar=False path: LayerNorm over D (the rearrange 'b d ... -> b ... d'
    # + LayerNorm(d) + rearrange back == normalize axis=1 in place).
    x = x_ref[...].astype(jnp.float32)                     # (TB, D, TL)
    mean = jnp.mean(x, axis=1, keepdims=True)
    xc = x - mean
    var = jnp.mean(xc * xc, axis=1, keepdims=True)
    inv = jax.lax.rsqrt(var + eps)                         # (TB, 1, TL)
    wb = wb_ref[...]                                       # (2, D, 1), f32
    w = wb[0][None]                                        # (1, D, 1)
    b = wb[1][None]                                        # (1, D, 1)
    o_ref[...] = ((xc * inv) * w + b).astype(o_ref.dtype)


# ----------------------------- tiling helpers -------------------------------
_LANE = 128
_BLOCK_BYTES = 2 * 1024 * 1024   # per in/out block; ~4-6x resident w/ pipeline


def _round_up(n, m):
    return ((n + m - 1) // m) * m


def _largest_divisor_leq(n, cap):
    cap = max(1, min(n, cap))
    for cand in range(cap, 0, -1):
        if n % cand == 0:
            return cand
    return 1


def _choose_tiles(B, D, L, itemsize):
    """Pick (tb, tl): block = (tb, D, tl); tl is a multiple of 128.

    Targets ~_BLOCK_BYTES per block and keeps >=2 grid steps when possible so
    v7x's two TensorCores both get work (harmless on single-TC v5e/v6e).
    """
    l128 = _round_up(max(L, 1), _LANE)
    row_bytes = max(D * itemsize, 1)

    # Largest lane tile (multiple of 128) within the byte budget at tb=1.
    max_tl = max(_LANE, (_BLOCK_BYTES // row_bytes) // _LANE * _LANE)
    tl = min(l128, max_tl)
    n_l = -(-L // tl)                                       # cdiv

    # Batch blocking fills the remaining byte budget (amortizes step overhead).
    tb_cap = max(1, _BLOCK_BYTES // (row_bytes * tl))
    tb = _largest_divisor_leq(B, tb_cap)

    # Keep at least 2 "parallel" grid steps (v7x: 2 TCs; also enables in/out
    # pipelining overlap).
    if (B // tb) * n_l < 2:
        if B > 1:
            tb = _largest_divisor_leq(B, B // 2)
        elif tl > _LANE:
            tl = max(_LANE, (tl // 2) // _LANE * _LANE)
            n_l = -(-L // tl)

    # TODO(synk): for tiny D (<8 for f32 / <16 for bf16) fold part of the
    # spatial axis into the sublane dim to avoid 8-sublane padding waste.
    return tb, tl


def _run_tln(kernel, param_specs, params, x):
    B, D = x.shape[0], x.shape[1]
    L = int(math.prod(x.shape[2:])) if x.ndim > 2 else 1
    x2 = x.reshape(B, D, L)

    tb, tl = _choose_tiles(B, D, L, x2.dtype.itemsize)
    grid = (B // tb, pl.cdiv(L, tl))

    x_spec = pl.BlockSpec((tb, D, tl), lambda b, l: (b, 0, l))
    out = pl.pallas_call(
        kernel,
        out_shape=jax.ShapeDtypeStruct((B, D, L), x.dtype),
        grid_spec=pltpu.PrefetchScalarGridSpec(
            num_scalar_prefetch=0,
            grid=grid,
            in_specs=list(param_specs) + [x_spec],
            out_specs=pl.BlockSpec((tb, D, tl), lambda b, l: (b, 0, l)),
        ),
        compiler_params=pltpu.CompilerParams(
            dimension_semantics=("parallel", "parallel"),
            vmem_limit_bytes=48 * 1024 * 1024,
        ),
    )(*params, x2)

    return out.reshape(x.shape)


# ----------------------------- public wrappers -------------------------------
def transposed_ln_scalar(x, m, s):
    """TransposedLN(d, scalar=True).forward(x);  x: (B, D, *rest)."""
    m2 = jnp.asarray(m, jnp.float32).reshape(1, 1)
    s2 = jnp.asarray(s, jnp.float32).reshape(1, 1)
    m_spec = pl.BlockSpec((1, 1), lambda b, l: (0, 0), memory_space=pltpu.SMEM)
    s_spec = pl.BlockSpec((1, 1), lambda b, l: (0, 0), memory_space=pltpu.SMEM)
    return _run_tln(_tln_scalar_kernel, [m_spec, s_spec], [m2, s2], x)


def transposed_ln_layernorm(x, weight, bias, eps=1e-5):
    """TransposedLN(d, scalar=False).forward(x);  x: (B, D, *rest)."""
    D = x.shape[1]
    wb = jnp.stack(
        [jnp.asarray(weight, jnp.float32).reshape(D),
         jnp.asarray(bias, jnp.float32).reshape(D)],
        axis=0,
    ).reshape(2, D, 1)                                     # fused single operand
    wb_spec = pl.BlockSpec((2, D, 1), lambda b, l: (0, 0, 0))
    return _run_tln(
        functools.partial(_tln_layernorm_kernel, eps=eps), [wb_spec], [wb], x
    )


# ----------------------------- pure-JAX references ---------------------------
def _ref_scalar(x, m, s):
    mean = jnp.mean(x, axis=1, keepdims=True)
    std = jnp.sqrt(jnp.mean((x - mean) ** 2, axis=1, keepdims=True))
    return s / std * (x - mean + m)


def _ref_layernorm(x, w, b, eps=1e-5):
    mean = jnp.mean(x, axis=1, keepdims=True)
    var = jnp.mean((x - mean) ** 2, axis=1, keepdims=True)
    xn = (x - mean) / jnp.sqrt(var + eps)
    shape = (1, x.shape[1]) + (1,) * (x.ndim - 2)
    return xn * w.reshape(shape) + b.reshape(shape)


if __name__ == "__main__":
    key = jax.random.PRNGKey(0)

    # Primary shape: (B, D, spatial, spatial) -> L = 256 (lane-aligned).
    B, D = 2, 4
    x = jax.random.normal(key, (B, D, 16, 16), dtype=jnp.float32)

    # scalar=True params (module init is m=zeros(1), s=ones(1); use non-trivial
    # values to exercise the math).
    m = jnp.float32(0.25)
    s = jnp.float32(1.5)

    y = transposed_ln_scalar(x, m, s)
    jax.block_until_ready(y)
    y_ref = _ref_scalar(x, m, s)
    assert jnp.allclose(y, y_ref, atol=1e-5, rtol=1e-5), "scalar path mismatch"

    # scalar=False params: nn.LayerNorm(d) weight (D,), bias (D,).
    kw, kb = jax.random.split(jax.random.PRNGKey(1))
    weight = 1.0 + 0.1 * jax.random.normal(kw, (D,), dtype=jnp.float32)
    bias = 0.1 * jax.random.normal(kb, (D,), dtype=jnp.float32)

    y2 = transposed_ln_layernorm(x, weight, bias)
    jax.block_until_ready(y2)
    y2_ref = _ref_layernorm(x, weight, bias)
    assert jnp.allclose(y2, y2_ref, atol=1e-5, rtol=1e-5), "layernorm path mismatch"

    # Second shape: non-128-aligned trailing dims (L = 6*16 = 96) exercises the
    # ragged last lane tile (no host-side pad/slice anymore).
    x3 = jax.random.normal(jax.random.PRNGKey(2), (2, 4, 6, 16), dtype=jnp.float32)
    y3 = transposed_ln_scalar(x3, m, s)
    jax.block_until_ready(y3)
    assert jnp.allclose(y3, _ref_scalar(x3, m, s), atol=1e-5, rtol=1e-5)

    y4 = transposed_ln_layernorm(x3, weight, bias)
    jax.block_until_ready(y4)
    assert jnp.allclose(y4, _ref_layernorm(x3, weight, bias), atol=1e-5, rtol=1e-5)

    print("KERNEL_OK")
</pallas_src>

<mosaic_0001>
module attributes {stable_mosaic.version = 11 : i64} {
  func.func @_tln_scalar_kernel(%arg0: i32, %arg1: i32, %arg2: memref<1x1xf32, #tpu.memory_space<smem>>, %arg3: memref<1x1xf32, #tpu.memory_space<smem>>, %arg4: memref<1x4x256xf32, #tpu.memory_space<vmem>>, %arg5: memref<1x4x256xf32, #tpu.memory_space<vmem>>) attributes {dimension_semantics = [#tpu.dimension_semantics<parallel>, #tpu.dimension_semantics<parallel>], iteration_bounds = array<i64: 2, 1>, scalar_prefetch = 0 : i64, scratch_operands = 0 : i64, tpu.core_type = #tpu.core_type<tc>, window_params = [{transform_indices = @transform_0, window_bounds = array<i64: 1, 1>}, {transform_indices = @transform_1, window_bounds = array<i64: 1, 1>}, {transform_indices = @transform_2, window_bounds = array<i64: 1, 4, 256>}, {transform_indices = @transform_3, window_bounds = array<i64: 1, 4, 256>}]} {
    %c0 = arith.constant 0 : index
    %c0_0 = arith.constant 0 : index
    %c0_1 = arith.constant 0 : index
    %0 = vector.load %arg4[%c0, %c0_0, %c0_1] : memref<1x4x256xf32, #tpu.memory_space<vmem>>, vector<1x4x256xf32>
    %cst = arith.constant dense<0.000000e+00> : vector<1x256xf32>
    %1 = vector.multi_reduction <add>, %0, %cst [1] : vector<1x4x256xf32> to vector<1x256xf32>
    %2 = vector.shape_cast %1 : vector<1x256xf32> to vector<1x1x256xf32>
    %cst_2 = arith.constant 4.000000e+00 : f32
    %3 = vector.broadcast %cst_2 : f32 to vector<1x1x256xf32>
    %4 = arith.divf %2, %3 : vector<1x1x256xf32>
    %5 = vector.broadcast %4 : vector<1x1x256xf32> to vector<1x4x256xf32>
    %6 = arith.subf %0, %5 : vector<1x4x256xf32>
    %7 = arith.mulf %6, %6 : vector<1x4x256xf32>
    %cst_3 = arith.constant dense<0.000000e+00> : vector<1x256xf32>
    %8 = vector.multi_reduction <add>, %7, %cst_3 [1] : vector<1x4x256xf32> to vector<1x256xf32>
    %9 = vector.shape_cast %8 : vector<1x256xf32> to vector<1x1x256xf32>
    %cst_4 = arith.constant 4.000000e+00 : f32
    %10 = vector.broadcast %cst_4 : f32 to vector<1x1x256xf32>
    %11 = arith.divf %9, %10 : vector<1x1x256xf32>
    %c0_5 = arith.constant 0 : index
    %c0_6 = arith.constant 0 : index
    %12 = memref.load %arg3[%c0_5, %c0_6] : memref<1x1xf32, #tpu.memory_space<smem>>
    %13 = math.rsqrt %11 : vector<1x1x256xf32>
    %14 = vector.broadcast %12 : f32 to vector<1x1x256xf32>
    %15 = arith.mulf %14, %13 : vector<1x1x256xf32>
    %c0_7 = arith.constant 0 : index
    %c0_8 = arith.constant 0 : index
    %16 = memref.load %arg2[%c0_7, %c0_8] : memref<1x1xf32, #tpu.memory_space<smem>>
    %17 = vector.broadcast %16 : f32 to vector<1x4x256xf32>
    %18 = arith.addf %6, %17 : vector<1x4x256xf32>
    %19 = vector.broadcast %15 : vector<1x1x256xf32> to vector<1x4x256xf32>
    %20 = arith.mulf %19, %18 : vector<1x4x256xf32>
    %c0_9 = arith.constant 0 : index
    %c0_10 = arith.constant 0 : index
    %c0_11 = arith.constant 0 : index
    %21 = vector.load %arg5[%c0_9, %c0_10, %c0_11] : memref<1x4x256xf32, #tpu.memory_space<vmem>>, vector<1x4x256xf32>
    tpu.vector_store %arg5[%c0_9, %c0_10, %c0_11], %20 {strides = array<i32>} : memref<1x4x256xf32, #tpu.memory_space<vmem>>, vector<1x4x256xf32>,
    return
  }
  func.func @transform_0(%arg0: i32, %arg1: i32) -> (i32, i32) {
    %c0_i32 = arith.constant 0 : i32
    %c0_i32_0 = arith.constant 0 : i32
    %c0_i32_1 = arith.constant 0 : i32
    return %c0_i32, %c0_i32_0 : i32, i32
  }
  func.func @transform_1(%arg0: i32, %arg1: i32) -> (i32, i32) {
    %c0_i32 = arith.constant 0 : i32
    %c0_i32_0 = arith.constant 0 : i32
    %c0_i32_1 = arith.constant 0 : i32
    return %c0_i32, %c0_i32_0 : i32, i32
  }
  func.func @transform_2(%arg0: i32, %arg1: i32) -> (i32, i32, i32) {
    %c0_i32 = arith.constant 0 : i32
    %c0_i32_0 = arith.constant 0 : i32
    return %arg0, %c0_i32, %arg1 : i32, i32, i32
  }
  func.func @transform_3(%arg0: i32, %arg1: i32) -> (i32, i32, i32) {
    %c0_i32 = arith.constant 0 : i32
    %c0_i32_0 = arith.constant 0 : i32
    return %arg0, %c0_i32, %arg1 : i32, i32, i32
  }
}

</mosaic_0001>

<llo_original>
// kernel: tpu_custom_call.1
$region0: #{tpu_custom_call.1}
  #allocation0 [shape = 'u32[]', space=smem, size = 0x4, offset = 0x4, fixed_abs, tag = 'smem constant byte address 0x4 - core index']
  #allocation1 [shape = 'u32[144,128]{1,0:T(1,128)}', space=vmem, size = 0x12000, scoped, tag = 'internal scratch']
  #allocation2 [shape = 'f32[1,1]{1,0:T(1,128)S(6)}', space=smem, size = 0x200, scoped, tag = 'scoped memory for tpu_custom_call.1']
  #allocation3 [shape = 'f32[1,1]{1,0:T(1,128)S(6)}', space=smem, size = 0x200, scoped, tag = 'scoped memory for tpu_custom_call.1']
  %s0 = inlined_call_operand.<no memory space> [shape: f32[1,1], index: 0, kind: input, shape index: {}]
  %s1 = inlined_call_operand.<no memory space> [shape: f32[1,1], index: 1, kind: input, shape index: {}]
  %s2 = inlined_call_operand.hbm [shape: f32[2,4,256], index: 2, kind: input, shape index: {}]
  %s3 = inlined_call_operand.hbm [shape: f32[2,4,256], index: 3, kind: output, shape index: {}]
  %s4 = sld [smem:[#allocation0]]
  $region49: #{tpu_custom_call.1} parent=0
    _
  %s6 = ssub.s32 1, %s4
  %s7 = scalar_select 0, %s6, %s4
  %8 = sst [smem:[#allocation2]] %s0
  %9 = sst [smem:[#allocation3]] %s1
  $region1: #{tpu_custom_call.1} parent=0
    #allocation4 [shape = 'u8[8192]{0}', space=vmem, size = 0x2000, scoped, tag = 'input window, operand 2']
    #allocation5 [shape = 's32[2]{0}', space=sflag, size = 0x8, scoped, tag = 'scoped memory for tpu_custom_call.1']
    #allocation6 [shape = 's32[2]{0}', space=sflag, size = 0x8, scoped, tag = 'scoped memory for tpu_custom_call.1']
    #allocation7 [shape = 'u8[8192]{0}', space=vmem, size = 0x2000, scoped, tag = 'output window, operand 0']
    %10 = vsyncpa [#allocation5], 0
    %s11 = scalar_lea.sflag [#allocation5], 1
    %12 = vsyncpa %s11, 0
    %13 = vsyncpa [#allocation6], 0
    %s14 = scalar_lea.sflag [#allocation6], 1
    %15 = vsyncpa %s14, 0
    loop: start=0, step=1, limit=4
    $region2: #{tpu_custom_call.1} parent=1 // loop_pre_header
      _
    $region3: #{tpu_custom_call.1} parent=1 // loop_header
      %s17 = sphi 0, %s21
      %p18 = scmp.ge.s32.totalorder %s17, 4
      %s24 = sphi 0, %s36
      %s25 = sphi 0, %s32
      %s26 = sphi 0, %s24
      %s27 = sphi 0, %s25
      %s28 = sphi 0, %s26
      %s29 = sphi 0, %s27
      %s37 = sphi 0, %s37
      %s39 = sphi 0, %s37
      %s40 = sphi 0, %s39
      %s54 = sphi 0, %s40
      %s58 = sphi 0, %s58
      %s60 = sphi 0, %s58
      %s61 = sphi 0, %s60
      %s75 = sphi 0, %s61
      %s83 = sphi 0, %s85
      %s86 = sphi 0, %s83
      %s87 = sphi 0, %s86
      %s103 = sphi 0, %s87
      %s111 = sphi 0, %s113
      %s114 = sphi 0, %s111
      %s115 = sphi 0, %s114
      %s131 = sphi 0, %s115
    $region4: #{tpu_custom_call.1} parent=1 // loop_header_branch
      %20 = sbr.rel (%p18) target = $region8
    $region5: #{tpu_custom_call.1} parent=1 // loop_body
      %s22 = ssub.s32 %s17, 1
      %s23 = ssub.s32 %s17, 2
      %s30 = sadd.s32 1, %s25
      %p31 = scmp.ge.s32.totalorder %s30, 1
      %s32 = scalar_select %p31, 0, %s30
      %s33 = sadd.s32 1, %s24
      %s34 = scalar_select %p31, %s33, %s24
      %p35 = scmp.ge.s32.totalorder %s34, 2
      %s36 = scalar_select %p35, 0, %s34
      %s38 = sadd.s32 %s37, 1
      %p41 = scmp.eq.s32.totalorder %s17, 1
      %p42 = scmp.ne.s32.totalorder %s37, %s39
      %p43 = scmp.eq.s32.totalorder %s17, 0
      %p44 = por %p42, %p43
      %p45 = scmp.ne.s32.totalorder %s37, %s39
      %p46 = scmp.eq.s32.totalorder %s22, 1
      %p47 = por %p45, %p46
      %p48 = scmp.ne.s32.totalorder %s39, %s40
      %p49 = scmp.eq.s32.totalorder %s22, 0
      %p50 = por %p48, %p49
      %p51 = scmp.ne.s32.totalorder %s39, %s40
      %p52 = scmp.eq.s32.totalorder %s23, 1
      %p53 = por %p51, %p52
      %p55 = scmp.ne.s32.totalorder %s40, %s54
      %p56 = scmp.eq.s32.totalorder %s23, 0
      %p57 = por %p55, %p56
      %s59 = sadd.s32 %s58, 1
      %p62 = scmp.eq.s32.totalorder %s17, 1
      %p63 = scmp.ne.s32.totalorder %s58, %s60
      %p64 = scmp.eq.s32.totalorder %s17, 0
      %p65 = por %p63, %p64
      %p66 = scmp.ne.s32.totalorder %s58, %s60
      %p67 = scmp.eq.s32.totalorder %s22, 1
      %p68 = por %p66, %p67
      %p69 = scmp.ne.s32.totalorder %s60, %s61
      %p70 = scmp.eq.s32.totalorder %s22, 0
      %p71 = por %p69, %p70
      %p72 = scmp.ne.s32.totalorder %s60, %s61
      %p73 = scmp.eq.s32.totalorder %s23, 1
      %p74 = por %p72, %p73
      %p76 = scmp.ne.s32.totalorder %s61, %s75
      %p77 = scmp.eq.s32.totalorder %s23, 0
      %p78 = por %p76, %p77
      %s79 = ssub.s32 %s24, %s36
      %s80 = ssub.s32 %s25, %s32
      %s81 = sor.u32 %s79, %s80
      %p82 = scmp.eq.s32.totalorder %s81, 0
      %s84 = sadd.s32 %s83, 1
      %s85 = scalar_select %p82, %s83, %s84
      %p88 = pneg %p82
      %p89 = scmp.eq.s32.totalorder %s17, 1
      %p90 = por %p88, %p89
      %p91 = scmp.ne.s32.totalorder %s83, %s86
      %p92 = scmp.eq.s32.totalorder %s17, 0
      %p93 = por %p91, %p92
      %p94 = scmp.ne.s32.totalorder %s83, %s86
      %p95 = scmp.eq.s32.totalorder %s22, 1
      %p96 = por %p94, %p95
      %p97 = scmp.ne.s32.totalorder %s86, %s87
      %p98 = scmp.eq.s32.totalorder %s22, 0
      %p99 = por %p97, %p98
      %p100 = scmp.ne.s32.totalorder %s86, %s87
      %p101 = scmp.eq.s32.totalorder %s23, 1
      %p102 = por %p100, %p101
      %p104 = scmp.ne.s32.totalorder %s87, %s103
      %p105 = scmp.eq.s32.totalorder %s23, 0
      %p106 = por %p104, %p105
      %s107 = ssub.s32 %s24, %s36
      %s108 = ssub.s32 %s25, %s32
      %s109 = sor.u32 %s107, %s108
      %p110 = scmp.eq.s32.totalorder %s109, 0
      %s112 = sadd.s32 %s111, 1
      %s113 = scalar_select %p110, %s111, %s112
      %p116 = pneg %p110
      %p117 = scmp.eq.s32.totalorder %s17, 1
      %p118 = por %p116, %p117
      %p119 = scmp.ne.s32.totalorder %s111, %s114
      %p120 = scmp.eq.s32.totalorder %s17, 0
      %p121 = por %p119, %p120
      %p122 = scmp.ne.s32.totalorder %s111, %s114
      %p123 = scmp.eq.s32.totalorder %s22, 1
      %p124 = por %p122, %p123
      %p125 = scmp.ne.s32.totalorder %s114, %s115
      %p126 = scmp.eq.s32.totalorder %s22, 0
      %p127 = por %p125, %p126
      %p128 = scmp.ne.s32.totalorder %s114, %s115
      %p129 = scmp.eq.s32.totalorder %s23, 1
      %p130 = por %p128, %p129
      %p132 = scmp.ne.s32.totalorder %s115, %s131
      %p133 = scmp.eq.s32.totalorder %s23, 0
      %p134 = por %p132, %p133
      %p135 = scmp.le.s32.totalorder 1, %s17
      %p136 = scmp.lt.s32.totalorder %s17, 3
      %p137 = pnand %p135, %p136
      %p138 = pneg %p137
      // Predicated region
      $region9: #{tpu_custom_call.1} parent=5 // pred_check
        _
      $region10: #{tpu_custom_call.1} parent=5 // pred_check_branch
        %140 = sbr.rel (%p137) target = $region12
      $region11: #{tpu_custom_call.1} parent=5 // pred_region
        %s141 = ssub.s32 %s17, 1
        // Predicated region
        $region13: #{tpu_custom_call.1} parent=11 // pred_check
          %p142 = pneg %p50
        $region14: #{tpu_custom_call.1} parent=11 // pred_check_branch
          %144 = sbr.rel (%p142) target = $region16
        $region15: #{tpu_custom_call.1} parent=11 // pred_region
          _
        $region16: #{tpu_custom_call.1} parent=11 // pred_fallthru
          _
        // Predicated region
        $region17: #{tpu_custom_call.1} parent=11 // pred_check
          %p145 = pneg %p71
        $region18: #{tpu_custom_call.1} parent=11 // pred_check_branch
          %147 = sbr.rel (%p145) target = $region20
        $region19: #{tpu_custom_call.1} parent=11 // pred_region
          _
        $region20: #{tpu_custom_call.1} parent=11 // pred_fallthru
          _
      $region12: #{tpu_custom_call.1} parent=5 // pred_fallthru
        _
      %p148 = scmp.lt.s32.totalorder %s17, 2
      // Predicated region
      $region21: #{tpu_custom_call.1} parent=5 // pred_check
        %p149 = pneg %p148
      $region22: #{tpu_custom_call.1} parent=5 // pred_check_branch
        %151 = sbr.rel (%p149) target = $region24
      $region23: #{tpu_custom_call.1} parent=5 // pred_region
        // Predicated region
        $region25: #{tpu_custom_call.1} parent=23 // pred_check
          %p152 = pneg %p93
        $region26: #{tpu_custom_call.1} parent=23 // pred_check_branch
          %154 = sbr.rel (%p152) target = $region28
        $region27: #{tpu_custom_call.1} parent=23 // pred_region
          %s155 = sand.u32 %s83, 1
          %s156 = scalar_lea.sflag [#allocation5], %s155
          %s157 = sand.u32 %s83, 1
          %s158 = smul.addr %s157, 8
          %s159 = scalar_lea.vmem [#allocation4], %s158
          %s160 = smul.u32 2, %s25
          %s162 = ssub.s32 128, 128
          %163 = vsyncadd %s156, %s162
          %s164 = smul.addr %s24, 2
          %s165 = sadd.s32 %s160, %s164
          %s166 = smul.addr %s165, 64
          %s167 = scalar_lea.hbm %s2, %s166
          %s169 = sshll.u32 %s159, 4
          %s170 = int_to_ptr.vmem [resolvable:$true] %s169
          %172 = dma.hbm_to_vmem [thread:$0]  %s167, 128, %s170, %s156
        $region28: #{tpu_custom_call.1} parent=23 // pred_fallthru
          _
      $region24: #{tpu_custom_call.1} parent=5 // pred_fallthru
        _
      %p173 = scmp.le.s32.totalorder 1, %s17
      %p174 = scmp.lt.s32.totalorder %s17, 3
      %p175 = pnand %p173, %p174
      %p176 = pneg %p175
      // Predicated region
      $region29: #{tpu_custom_call.1} parent=5 // pred_check
        _
      $region30: #{tpu_custom_call.1} parent=5 // pred_check_branch
        %178 = sbr.rel (%p175) target = $region32
      $region31: #{tpu_custom_call.1} parent=5 // pred_region
        %s179 = ssub.s32 %s17, 1
        %s180 = sand.u32 %s86, 1
        %s181 = scalar_lea.sflag [#allocation5], %s180
        %s182 = sand.u32 %s86, 1
        %s183 = smul.addr %s182, 8
        %s184 = scalar_lea.vmem [#allocation4], %s183
        // Predicated region
        $region33: #{tpu_custom_call.1} parent=31 // pred_check
          %p185 = pneg %p99
        $region34: #{tpu_custom_call.1} parent=31 // pred_check_branch
          %187 = sbr.rel (%p185) target = $region36
        $region35: #{tpu_custom_call.1} parent=31 // pred_region
          %188 = dma.done %s181, 128
        $region36: #{tpu_custom_call.1} parent=31 // pred_fallthru
          _
        %p189 = pneg %p50
        %p190 = pneg %p47
        %p191 = pneg %p71
        %p192 = pneg %p68
        %s193 = sand.u32 %s86, 1
        %s194 = scalar_lea.sflag [#allocation5], %s193
        %s195 = sand.u32 %s86, 1
        %s196 = smul.addr %s195, 8
        %s197 = scalar_lea.vmem [#allocation4], %s196
        %p198 = pneg %p99
        %p199 = pneg %p96
        %p200 = pneg %p127
        %p201 = pneg %p124
        %s202 = sand.u32 %s114, 1
        %s203 = scalar_lea.sflag [#allocation6], %s202
        %s204 = sand.u32 %s114, 1
        %s205 = smul.addr %s204, 8
        %s206 = scalar_lea.vmem [#allocation7], %s205
        %s207 = smul.u32 2, %s27
        %s208 = smul.u32 2, %s27
        %v209 = vld [vmem:[%s184] sm:$0xff]
        %v211 = vcombine.high %v209, %v209
        %vm213 = vcmask 1043456
        %v214 = vsel %vm213, %v209, 0.0
        %v215 = vrot.slane %v214, 4
        %v216 = vadd.f32 %v214, %v215
        %v217 = vrot.slane %v216, 2
        %v218 = vadd.f32 %v216, %v217
        %v219 = vrot.slane %v218, 1
        %v220 = vadd.f32 %v218, %v219
        %v221 = vsel %vm213, %v211, 0.0
        %v222 = vrot.slane %v221, 4
        %v223 = vadd.f32 %v221, %v222
        %v224 = vrot.slane %v223, 2
        %v225 = vadd.f32 %v223, %v224
        %v226 = vrot.slane %v225, 1
        %v227 = vadd.f32 %v225, %v226
        %v228 = vrcp.pop 4.0
        %v229 = vmul.f32 %v220, %v228
        %v230 = vmul.f32 %v227, %v228
        %v233 = vcombine.low %v229, %v230
        %v235 = vsub.f32 %v209, %v233
        %v236 = vmul.f32 %v235, %v235
        %v238 = vcombine.high %v236, %v236
        %v240 = vsel %vm213, %v236, 0.0
        %v241 = vrot.slane %v240, 4
        %v242 = vadd.f32 %v240, %v241
        %v243 = vrot.slane %v242, 2
        %v244 = vadd.f32 %v242, %v243
        %v245 = vrot.slane %v244, 1
        %v246 = vadd.f32 %v244, %v245
        %v247 = vsel %vm213, %v238, 0.0
        %v248 = vrot.slane %v247, 4
        %v249 = vadd.f32 %v247, %v248
        %v250 = vrot.slane %v249, 2
        %v251 = vadd.f32 %v249, %v250
        %v252 = vrot.slane %v251, 1
        %v253 = vadd.f32 %v251, %v252
        %v254 = vmul.f32 %v246, %v228
        %v255 = vmul.f32 %v253, %v228
        %s256 = sld [smem:[#allocation3]]
        %v257 = vrsqrt.pop %v254
        %v258 = vrsqrt.pop %v255
        %v259 = vstv %s256
        %v260 = vmul.f32 %v259, %v257
        %v261 = vmul.f32 %v259, %v258
        %s262 = sld [smem:[#allocation2]]
        %v263 = vstv %s262
        %v264 = vadd.f32 %v235, %v263
        %v266 = vcombine.high %v264, %v264
        %v268 = vmul.f32 %v260, %v264
        %v269 = vmul.f32 %v261, %v266
        %v272 = vcombine.low %v268, %v269
        %274 = vst [vmem:[%s206] sm:$0xff] %v272
        %s275 = sand.u32 %s114, 1
        %s276 = scalar_lea.sflag [#allocation6], %s275
        %s277 = sand.u32 %s114, 1
        %s278 = smul.addr %s277, 8
        %s279 = scalar_lea.vmem [#allocation7], %s278
        // Predicated region
        $region37: #{tpu_custom_call.1} parent=31 // pred_check
          %p280 = pneg %p124
        $region38: #{tpu_custom_call.1} parent=31 // pred_check_branch
          %282 = sbr.rel (%p280) target = $region40
        $region39: #{tpu_custom_call.1} parent=31 // pred_region
          %s283 = smul.u32 2, %s27
          %s285 = ssub.s32 128, 128
          %286 = vsyncadd %s276, %s285
          %s287 = smul.addr %s26, 2
          %s288 = sadd.s32 %s283, %s287
          %s289 = smul.addr %s288, 64
          %s290 = scalar_lea.hbm %s3, %s289
          %s292 = sshll.u32 %s279, 4
          %s293 = int_to_ptr.vmem [resolvable:$true] %s292
          %295 = dma.vmem_to_hbm [thread:$0]  %s293, 128, %s290, %s276
        $region40: #{tpu_custom_call.1} parent=31 // pred_fallthru
          _
      $region32: #{tpu_custom_call.1} parent=5 // pred_fallthru
        _
      %p296 = scmp.le.s32.totalorder 2, %s17
      // Predicated region
      $region41: #{tpu_custom_call.1} parent=5 // pred_check
        %p297 = pneg %p296
      $region42: #{tpu_custom_call.1} parent=5 // pred_check_branch
        %299 = sbr.rel (%p297) target = $region44
      $region43: #{tpu_custom_call.1} parent=5 // pred_region
        %s300 = ssub.s32 %s17, 2
        // Predicated region
        $region45: #{tpu_custom_call.1} parent=43 // pred_check
          %p301 = pneg %p130
        $region46: #{tpu_custom_call.1} parent=43 // pred_check_branch
          %303 = sbr.rel (%p301) target = $region48
        $region47: #{tpu_custom_call.1} parent=43 // pred_region
          %s304 = sand.u32 %s115, 1
          %s305 = scalar_lea.sflag [#allocation6], %s304
          %s306 = sand.u32 %s115, 1
          %s307 = smul.addr %s306, 8
          %s308 = scalar_lea.vmem [#allocation7], %s307
          %309 = dma.done %s305, 128
        $region48: #{tpu_custom_call.1} parent=43 // pred_fallthru
          _
      $region44: #{tpu_custom_call.1} parent=5 // pred_fallthru
        _
    $region6: #{tpu_custom_call.1} parent=1 // loop_footer
      %s21 = sadd.s32 1, %s17
    $region7: #{tpu_custom_call.1} parent=1 // loop_footer_branch
      %16 = sbr.rel target = $region3
    $region8: #{tpu_custom_call.1} parent=1 // loop_exit
      _
    %310 = vsyncpa [#allocation5], 1
    %s311 = scalar_lea.sflag [#allocation5], 1
    %312 = vsyncpa %s311, 1
    %313 = vsyncpa [#allocation6], 1
    %s314 = scalar_lea.sflag [#allocation6], 1
    %315 = vsyncpa %s314, 1

</llo_original>
